<compile_context>
chip_gen: v5e
topology: v5e:2x2
jax: 0.10.0
libtpu: 0.0.40
codegen_flags: <defaults>
</compile_context>

<pallas_src>
import functools
import math

import jax
import jax.numpy as jnp
from jax import lax
from jax.experimental import pallas as pl
from jax.experimental.pallas import tpu as pltpu


def _round_up(n, m):
    return ((n + m - 1) // m) * m


def _pad2(a, rows, cols):
    return jnp.pad(a, ((0, rows - a.shape[0]), (0, cols - a.shape[1])))


# --------------------------------------------------------------------------
# Kernel 1: fused QKV projection (row-tiled over the sequence).
# --------------------------------------------------------------------------
def _qkv_kernel(x_ref, wqkv_ref, bqkv_ref, q_ref, k_ref, v_ref, *, d_int):
    x = x_ref[...].astype(jnp.bfloat16)                       # [TQ, Dp]
    qkv = jnp.dot(x, wqkv_ref[...], preferred_element_type=jnp.float32)
    qkv = qkv + bqkv_ref[...]                                 # [TQ, 3*DIp] f32
    q_ref[...] = qkv[:, :d_int].astype(q_ref.dtype)
    k_ref[...] = qkv[:, d_int:2 * d_int].astype(k_ref.dtype)
    v_ref[...] = qkv[:, 2 * d_int:3 * d_int].astype(v_ref.dtype)


# --------------------------------------------------------------------------
# Kernel 2: attention + output proj + residual + FFN (row-tiled over queries,
# K/V resident in VMEM across the grid).
# --------------------------------------------------------------------------
def _attn_ffn_kernel(scale, t_valid,
                     x_ref, q_ref, k_ref, v_ref,
                     wp_ref, bp_ref, w1_ref, b1_ref, w2_ref, b2_ref,
                     out_ref, probs_ref):
    q = q_ref[...]                                            # [TQ, DIp] bf16
    k = k_ref[...]                                            # [Tp, DIp] bf16
    v = v_ref[...]                                            # [Tp, DIp] bf16

    # scores = q @ k^T without materializing a transpose of k.
    scores = lax.dot_general(q, k, (((1,), (1,)), ((), ())),
                             preferred_element_type=jnp.float32) * scale
    t_pad = k.shape[0]
    if t_valid < t_pad:  # static: mask padded key columns before softmax
        col = lax.broadcasted_iota(jnp.int32, scores.shape, 1)
        scores = jnp.where(col < t_valid, scores, jnp.float32(-1e30))

    # Softmax in f32 (max-subtracted), EUP reciprocal instead of VALU divide.
    m = jnp.max(scores, axis=-1, keepdims=True)
    e = jnp.exp(scores - m)
    denom = jnp.sum(e, axis=-1, keepdims=True)
    probs = e * pl.reciprocal(denom, approx=True)             # [TQ, Tp] f32
    probs_ref[...] = probs.astype(probs_ref.dtype)

    attn = jnp.dot(probs.astype(jnp.bfloat16), v,
                   preferred_element_type=jnp.float32)        # [TQ, DIp]
    proj = jnp.dot(attn.astype(jnp.bfloat16), wp_ref[...],
                   preferred_element_type=jnp.float32) + bp_ref[...]
    resid = proj + x_ref[...]                                 # residual (f32)

    h = jnp.dot(resid.astype(jnp.bfloat16), w1_ref[...],
                preferred_element_type=jnp.float32) + b1_ref[...]
    h = jnp.maximum(h, 0.0)                                   # ReLU
    out = jnp.dot(h.astype(jnp.bfloat16), w2_ref[...],
                  preferred_element_type=jnp.float32) + b2_ref[...]
    out_ref[...] = out.astype(out_ref.dtype)


# --------------------------------------------------------------------------
# Wrapper
# --------------------------------------------------------------------------
def transformer_layer(x, params, *, tq=128):
    """x: [T, d_model] f32.  Returns (output [T, d_model], probs [T, T]) in f32."""
    T, d_model = x.shape
    d_internal = params["wq"].shape[1]
    scale = 1.0 / math.sqrt(float(d_internal))

    Tp = _round_up(T, tq)                 # tq is a multiple of 128 -> lane-dense probs
    Dp = _round_up(d_model, 128)
    DIp = _round_up(d_internal, 128)
    grid = (Tp // tq,)

    x_p = _pad2(x, Tp, Dp).astype(jnp.float32)

    def pad_w(w, r, c):
        return _pad2(w, r, c).astype(jnp.bfloat16)

    def pad_b(b, c):
        return _pad2(b, 1, c).astype(jnp.float32)

    wqkv = jnp.concatenate([pad_w(params["wq"], Dp, DIp),
                            pad_w(params["wk"], Dp, DIp),
                            pad_w(params["wv"], Dp, DIp)], axis=1)   # [Dp, 3*DIp]
    bqkv = jnp.concatenate([pad_b(params["bq"], DIp),
                            pad_b(params["bk"], DIp),
                            pad_b(params["bv"], DIp)], axis=1)       # [1, 3*DIp]
    wp = pad_w(params["wp"], DIp, Dp); bp = pad_b(params["bp"], Dp)
    w1 = pad_w(params["w1"], Dp, DIp); b1 = pad_b(params["b1"], DIp)
    w2 = pad_w(params["w2"], DIp, Dp); b2 = pad_b(params["b2"], Dp)

    # VMEM budget estimate: bf16 weights + resident K/V + double-buffered row tiles.
    weight_bytes = (3 * Dp * DIp + DIp * Dp + Dp * DIp + DIp * Dp) * 2
    bias_bytes = (3 * DIp + Dp + DIp + Dp) * 4
    kv_bytes = 2 * Tp * DIp * 2
    tile_bytes = 2 * (tq * Dp * 4 + tq * DIp * 2 + tq * Dp * 4 + tq * Tp * 4)
    est = weight_bytes + bias_bytes + kv_bytes + tile_bytes
    vmem_limit = int(min(max(2 * est, 32 * 1024 * 1024), 48 * 1024 * 1024))
    cparams = pltpu.CompilerParams(dimension_semantics=("parallel",),
                                   vmem_limit_bytes=vmem_limit)

    # ---- Kernel 1: fused QKV projection -----------------------------------
    q, k, v = pl.pallas_call(
        functools.partial(_qkv_kernel, d_int=DIp),
        out_shape=(jax.ShapeDtypeStruct((Tp, DIp), jnp.bfloat16),
                   jax.ShapeDtypeStruct((Tp, DIp), jnp.bfloat16),
                   jax.ShapeDtypeStruct((Tp, DIp), jnp.bfloat16)),
        grid_spec=pltpu.PrefetchScalarGridSpec(
            num_scalar_prefetch=0, grid=grid,
            in_specs=[pl.BlockSpec((tq, Dp), lambda i: (i, 0)),      # x row tile
                      pl.BlockSpec((Dp, 3 * DIp), lambda i: (0, 0)),  # Wqkv resident
                      pl.BlockSpec((1, 3 * DIp), lambda i: (0, 0))],  # bqkv resident
            out_specs=(pl.BlockSpec((tq, DIp), lambda i: (i, 0)),
                       pl.BlockSpec((tq, DIp), lambda i: (i, 0)),
                       pl.BlockSpec((tq, DIp), lambda i: (i, 0)))),
        compiler_params=cparams,
    )(x_p, wqkv, bqkv)

    # ---- Kernel 2: attention + proj + residual + FFN ----------------------
    out_p, probs_p = pl.pallas_call(
        functools.partial(_attn_ffn_kernel, scale, T),
        out_shape=(jax.ShapeDtypeStruct((Tp, Dp), jnp.float32),
                   jax.ShapeDtypeStruct((Tp, Tp), jnp.float32)),
        grid_spec=pltpu.PrefetchScalarGridSpec(
            num_scalar_prefetch=0, grid=grid,
            in_specs=[pl.BlockSpec((tq, Dp), lambda i: (i, 0)),       # x row tile
                      pl.BlockSpec((tq, DIp), lambda i: (i, 0)),      # q row tile
                      pl.BlockSpec((Tp, DIp), lambda i: (0, 0)),      # K resident
                      pl.BlockSpec((Tp, DIp), lambda i: (0, 0)),      # V resident
                      pl.BlockSpec((DIp, Dp), lambda i: (0, 0)),      # Wp
                      pl.BlockSpec((1, Dp), lambda i: (0, 0)),        # bp
                      pl.BlockSpec((Dp, DIp), lambda i: (0, 0)),      # W1
                      pl.BlockSpec((1, DIp), lambda i: (0, 0)),       # b1
                      pl.BlockSpec((DIp, Dp), lambda i: (0, 0)),      # W2
                      pl.BlockSpec((1, Dp), lambda i: (0, 0))],       # b2
            out_specs=(pl.BlockSpec((tq, Dp), lambda i: (i, 0)),
                       pl.BlockSpec((tq, Tp), lambda i: (i, 0)))),
        compiler_params=cparams,
    )(x_p, q, k, v, wp, bp, w1, b1, w2, b2)

    return out_p[:T, :d_model], probs_p[:T, :T]


# --------------------------------------------------------------------------
# Params / reference
# --------------------------------------------------------------------------
def init_params(key, d_model, d_internal):
    """Deterministic params mimicking nn.Linear init (uniform +-1/sqrt(fan_in)).
    Weights stored as [in_features, out_features]; biases as [1, out_features]."""
    def linear(k, fan_in, fan_out):
        kw, kb = jax.random.split(k)
        bound = 1.0 / jnp.sqrt(jnp.float32(fan_in))
        w = jax.random.uniform(kw, (fan_in, fan_out), jnp.float32, -bound, bound)
        b = jax.random.uniform(kb, (1, fan_out), jnp.float32, -bound, bound)
        return w, b

    keys = jax.random.split(key, 6)
    wq, bq = linear(keys[0], d_model, d_internal)
    wk, bk = linear(keys[1], d_model, d_internal)
    wv, bv = linear(keys[2], d_model, d_internal)
    wp, bp = linear(keys[3], d_internal, d_model)
    w1, b1 = linear(keys[4], d_model, d_internal)
    w2, b2 = linear(keys[5], d_internal, d_model)
    return dict(wq=wq, bq=bq, wk=wk, bk=bk, wv=wv, bv=bv,
                wp=wp, bp=bp, w1=w1, b1=b1, w2=w2, b2=b2)


def reference(x, p):
    """Pure-JAX f32 reference matching the PyTorch forward exactly."""
    q = x @ p["wq"] + p["bq"]
    k = x @ p["wk"] + p["bk"]
    v = x @ p["wv"] + p["bv"]
    scores = (q @ k.T) / jnp.sqrt(jnp.float32(q.shape[-1]))
    probs = jax.nn.softmax(scores, axis=-1)
    attn = probs @ v
    proj = attn @ p["wp"] + p["bp"]
    resid = proj + x
    h = jnp.maximum(resid @ p["w1"] + p["b1"], 0.0)
    out = h @ p["w2"] + p["b2"]
    return out, probs


if __name__ == "__main__":
    T, d_model, d_internal = 8, 32, 16

    key = jax.random.PRNGKey(0)
    kx, kp = jax.random.split(key)
    x = jax.random.normal(kx, (T, d_model), jnp.float32)
    params = init_params(kp, d_model, d_internal)

    out, probs = transformer_layer(x, params)
    jax.block_until_ready((out, probs))

    ref_out, ref_probs = reference(x, params)
    # bf16 matmul operands (f32 accumulation) -> loosened tolerance vs. f32 reference.
    assert jnp.allclose(out, ref_out, atol=5e-2, rtol=5e-2)
    assert jnp.allclose(probs, ref_probs, atol=5e-2, rtol=5e-2)

    print("KERNEL_OK")
</pallas_src>

<mosaic_0001>
module attributes {stable_mosaic.version = 11 : i64} {
  func.func @_qkv_kernel(%arg0: i32, %arg1: memref<128x128xf32, #tpu.memory_space<vmem>>, %arg2: memref<128x384xbf16, #tpu.memory_space<vmem>>, %arg3: memref<1x384xf32, #tpu.memory_space<vmem>>, %arg4: memref<128x128xbf16, #tpu.memory_space<vmem>>, %arg5: memref<128x128xbf16, #tpu.memory_space<vmem>>, %arg6: memref<128x128xbf16, #tpu.memory_space<vmem>>) attributes {dimension_semantics = [#tpu.dimension_semantics<parallel>], iteration_bounds = array<i64: 1>, scalar_prefetch = 0 : i64, scratch_operands = 0 : i64, tpu.core_type = #tpu.core_type<tc>, window_params = [{transform_indices = @transform_0, window_bounds = array<i64: 128, 128>}, {pipeline_mode = #tpu.pipeline_mode<synchronous>, transform_indices = @transform_1, window_bounds = array<i64: 128, 384>}, {pipeline_mode = #tpu.pipeline_mode<synchronous>, transform_indices = @transform_2, window_bounds = array<i64: 1, 384>}, {transform_indices = @transform_3, window_bounds = array<i64: 128, 128>}, {transform_indices = @transform_4, window_bounds = array<i64: 128, 128>}, {transform_indices = @transform_5, window_bounds = array<i64: 128, 128>}]} {
    %c0 = arith.constant 0 : index
    %c0_0 = arith.constant 0 : index
    %0 = vector.load %arg1[%c0, %c0_0] : memref<128x128xf32, #tpu.memory_space<vmem>>, vector<128x128xf32>
    %1 = arith.truncf %0 : vector<128x128xf32> to vector<128x128xbf16>
    %c0_1 = arith.constant 0 : index
    %c0_2 = arith.constant 0 : index
    %2 = vector.load %arg2[%c0_1, %c0_2] : memref<128x384xbf16, #tpu.memory_space<vmem>>, vector<128x384xbf16>
    %cst = arith.constant dense<0.000000e+00> : vector<128x384xf32>
    %3 = tpu.matmul %1, %2, %cst {dimension_numbers = #tpu.dot_dimension_numbers<[1], [0], [0], [1], [0, 0, 1, 1], [], []>} : vector<128x128xbf16>, vector<128x384xbf16>, vector<128x384xf32> -> vector<128x384xf32>
    %c0_3 = arith.constant 0 : index
    %c0_4 = arith.constant 0 : index
    %4 = vector.load %arg3[%c0_3, %c0_4] : memref<1x384xf32, #tpu.memory_space<vmem>>, vector<1x384xf32>
    %5 = vector.broadcast %4 : vector<1x384xf32> to vector<128x384xf32>
    %6 = arith.addf %3, %5 : vector<128x384xf32>
    %7 = vector.extract_strided_slice %6 {offsets = [0, 0], sizes = [128, 128], strides = [1, 1]} : vector<128x384xf32> to vector<128x128xf32>
    %8 = arith.truncf %7 : vector<128x128xf32> to vector<128x128xbf16>
    %c0_5 = arith.constant 0 : index
    %c0_6 = arith.constant 0 : index
    %9 = vector.load %arg4[%c0_5, %c0_6] : memref<128x128xbf16, #tpu.memory_space<vmem>>, vector<128x128xbf16>
    tpu.vector_store %arg4[%c0_5, %c0_6], %8 {strides = array<i32>} : memref<128x128xbf16, #tpu.memory_space<vmem>>, vector<128x128xbf16>,
    %10 = vector.extract_strided_slice %6 {offsets = [0, 128], sizes = [128, 128], strides = [1, 1]} : vector<128x384xf32> to vector<128x128xf32>
    %11 = arith.truncf %10 : vector<128x128xf32> to vector<128x128xbf16>
    %c0_7 = arith.constant 0 : index
    %c0_8 = arith.constant 0 : index
    %12 = vector.load %arg5[%c0_7, %c0_8] : memref<128x128xbf16, #tpu.memory_space<vmem>>, vector<128x128xbf16>
    tpu.vector_store %arg5[%c0_7, %c0_8], %11 {strides = array<i32>} : memref<128x128xbf16, #tpu.memory_space<vmem>>, vector<128x128xbf16>,
    %13 = vector.extract_strided_slice %6 {offsets = [0, 256], sizes = [128, 128], strides = [1, 1]} : vector<128x384xf32> to vector<128x128xf32>
    %14 = arith.truncf %13 : vector<128x128xf32> to vector<128x128xbf16>
    %c0_9 = arith.constant 0 : index
    %c0_10 = arith.constant 0 : index
    %15 = vector.load %arg6[%c0_9, %c0_10] : memref<128x128xbf16, #tpu.memory_space<vmem>>, vector<128x128xbf16>
    tpu.vector_store %arg6[%c0_9, %c0_10], %14 {strides = array<i32>} : memref<128x128xbf16, #tpu.memory_space<vmem>>, vector<128x128xbf16>,
    return
  }
  func.func @transform_0(%arg0: i32) -> (i32, i32) {
    %c0_i32 = arith.constant 0 : i32
    %c0_i32_0 = arith.constant 0 : i32
    return %arg0, %c0_i32 : i32, i32
  }
  func.func @transform_1(%arg0: i32) -> (i32, i32) {
    %c0_i32 = arith.constant 0 : i32
    %c0_i32_0 = arith.constant 0 : i32
    %c0_i32_1 = arith.constant 0 : i32
    return %c0_i32, %c0_i32_0 : i32, i32
  }
  func.func @transform_2(%arg0: i32) -> (i32, i32) {
    %c0_i32 = arith.constant 0 : i32
    %c0_i32_0 = arith.constant 0 : i32
    %c0_i32_1 = arith.constant 0 : i32
    return %c0_i32, %c0_i32_0 : i32, i32
  }
  func.func @transform_3(%arg0: i32) -> (i32, i32) {
    %c0_i32 = arith.constant 0 : i32
    %c0_i32_0 = arith.constant 0 : i32
    return %arg0, %c0_i32 : i32, i32
  }
  func.func @transform_4(%arg0: i32) -> (i32, i32) {
    %c0_i32 = arith.constant 0 : i32
    %c0_i32_0 = arith.constant 0 : i32
    return %arg0, %c0_i32 : i32, i32
  }
  func.func @transform_5(%arg0: i32) -> (i32, i32) {
    %c0_i32 = arith.constant 0 : i32
    %c0_i32_0 = arith.constant 0 : i32
    return %arg0, %c0_i32 : i32, i32
  }
}

</mosaic_0001>

<llo_original>
// kernel: tpu_custom_call.1
$region0: #{tpu_custom_call.1}
  #allocation0 [shape = 'u32[]', space=smem, size = 0x4, offset = 0x4, fixed_abs, tag = 'smem constant byte address 0x4 - core index']
  #allocation1 [shape = 'u32[72,128]{1,0:T(1,128)}', space=vmem, size = 0x9000, scoped, tag = 'internal scratch']
  %s0 = inlined_call_operand.hbm [shape: f32[128,128], index: 0, kind: input, shape index: {}]
  %s1 = inlined_call_operand.hbm [shape: bf16[128,384], index: 1, kind: input, shape index: {}]
  %s2 = inlined_call_operand.hbm [shape: f32[1,384], index: 2, kind: input, shape index: {}]
  %s3 = inlined_call_operand.hbm [shape: bf16[128,128], index: 3, kind: output, shape index: {0}]
  %s4 = inlined_call_operand.hbm [shape: bf16[128,128], index: 4, kind: output, shape index: {1}]
  %s5 = inlined_call_operand.hbm [shape: bf16[128,128], index: 5, kind: output, shape index: {2}]
  %6 = xla_tuple %s3, %s4, %s5
  %s7 = sld [smem:[#allocation0]]
  $region50: #{tpu_custom_call.1} parent=0
    _
  %s9 = ssub.s32 1, %s7
  %s10 = scalar_select 0, %s9, %s7
  $region1: #{tpu_custom_call.1} parent=0
    #allocation2 [shape = 'u8[65536]{0}', space=vmem, size = 0x10000, scoped, tag = 'input window, operand 0, single buffered']
    #allocation3 [shape = 's32[1]{0}', space=sflag, size = 0x4, scoped, tag = 'scoped memory for tpu_custom_call.1']
    #allocation4 [shape = 's32[1]{0}', space=sflag, size = 0x4, scoped, tag = 'scoped memory for tpu_custom_call.1']
    #allocation5 [shape = 'u8[98304]{0}', space=vmem, size = 0x18000, scoped, tag = 'input window, operand 1, single buffered']
    #allocation6 [shape = 's32[1]{0}', space=sflag, size = 0x4, scoped, tag = 'scoped memory for tpu_custom_call.1']
    #allocation7 [shape = 'u8[1536]{0}', space=vmem, size = 0x800, scoped, tag = 'input window, operand 2, single buffered']
    #allocation8 [shape = 'u8[32768]{0}', space=vmem, size = 0x8000, scoped, tag = 'output window, operand 0, single buffered']
    #allocation9 [shape = 'u8[32768]{0}', space=vmem, size = 0x8000, scoped, tag = 'output window, operand 1, single buffered']
    #allocation10 [shape = 's32[1]{0}', space=sflag, size = 0x4, scoped, tag = 'scoped memory for tpu_custom_call.1']
    #allocation11 [shape = 'u8[32768]{0}', space=vmem, size = 0x8000, scoped, tag = 'output window, operand 2, single buffered']
    %11 = vsyncpa [#allocation3], 0
    %12 = vsyncpa [#allocation6], 0
    %13 = vsyncpa [#allocation4], 0
    %14 = vsyncpa [#allocation10], 0
    // Predicated region
    $region2: #{tpu_custom_call.1} parent=1 // pred_check
      _
    $region3: #{tpu_custom_call.1} parent=1 // pred_check_branch
      %16 = sbr.rel (0) target = $region5
    $region4: #{tpu_custom_call.1} parent=1 // pred_region
      %18 = vsyncadd [#allocation3], 0
      %s19 = sshll.u32 %s0, 4
      %s20 = int_to_ptr.hbm [resolvable:$true] %s19
      %s21 = sshll.u32 [#allocation2], 4
      %s22 = int_to_ptr.vmem [resolvable:$true] %s21
      %27 = dma.hbm_to_vmem [thread:$0]  %s20, 2048, %s22, [#allocation3], 128, 128, 8
    $region5: #{tpu_custom_call.1} parent=1 // pred_fallthru
      _
    // Predicated region
    $region6: #{tpu_custom_call.1} parent=1 // pred_check
      _
    $region7: #{tpu_custom_call.1} parent=1 // pred_check_branch
      %29 = sbr.rel (0) target = $region9
    $region8: #{tpu_custom_call.1} parent=1 // pred_region
      %31 = vsyncadd [#allocation6], 0
      %s32 = sshll.u32 %s1, 4
      %s33 = int_to_ptr.hbm [resolvable:$true] %s32
      %s34 = sshll.u32 [#allocation5], 4
      %s35 = int_to_ptr.vmem [resolvable:$true] %s34
      %40 = dma.hbm_to_vmem [thread:$0]  %s33, 3072, %s35, [#allocation6], 192, 192, 12
    $region9: #{tpu_custom_call.1} parent=1 // pred_fallthru
      _
    // Predicated region
    $region10: #{tpu_custom_call.1} parent=1 // pred_check
      _
    $region11: #{tpu_custom_call.1} parent=1 // pred_check_branch
      %42 = sbr.rel (0) target = $region13
    $region12: #{tpu_custom_call.1} parent=1 // pred_region
      %44 = vsyncadd [#allocation6], 0
      %s46 = sshll.u32 %s2, 4
      %s47 = int_to_ptr.hbm [resolvable:$true] %s46
      %s48 = sshll.u32 [#allocation7], 4
      %s49 = int_to_ptr.vmem [resolvable:$true] %s48
      %51 = dma.hbm_to_vmem [thread:$0]  %s47, 48, %s49, [#allocation6]
    $region13: #{tpu_custom_call.1} parent=1 // pred_fallthru
      _
    // Predicated region
    $region14: #{tpu_custom_call.1} parent=1 // pred_check
      _
    $region15: #{tpu_custom_call.1} parent=1 // pred_check_branch
      %53 = sbr.rel (0) target = $region17
    $region16: #{tpu_custom_call.1} parent=1 // pred_region
      %55 = dma.done [#allocation3], 2048
    $region17: #{tpu_custom_call.1} parent=1 // pred_fallthru
      _
    // Predicated region
    $region18: #{tpu_custom_call.1} parent=1 // pred_check
      _
    $region19: #{tpu_custom_call.1} parent=1 // pred_check_branch
      %57 = sbr.rel (0) target = $region21
    $region20: #{tpu_custom_call.1} parent=1 // pred_region
      %59 = dma.done [#allocation6], 3072
    $region21: #{tpu_custom_call.1} parent=1 // pred_fallthru
      _
    // Predicated region
    $region22: #{tpu_custom_call.1} parent=1 // pred_check
      _
    $region23: #{tpu_custom_call.1} parent=1 // pred_check_branch
      %61 = sbr.rel (0) target = $region25
    $region24: #{tpu_custom_call.1} parent=1 // pred_region
      %63 = dma.done [#allocation6], 48
    $region25: #{tpu_custom_call.1} parent=1 // pred_fallthru
      _
    %v64 = vld [vmem:[#allocation2] sm:$0xff]
    %v65 = vld [vmem:[#allocation2 + $0x8] sm:$0xff]
    %v66 = vld [vmem:[#allocation2 + $0x10] sm:$0xff]
    %v67 = vld [vmem:[#allocation2 + $0x18] sm:$0xff]
    %v68 = vld [vmem:[#allocation2 + $0x20] sm:$0xff]
    %v69 = vld [vmem:[#allocation2 + $0x28] sm:$0xff]
    %v70 = vld [vmem:[#allocation2 + $0x30] sm:$0xff]
    %v71 = vld [vmem:[#allocation2 + $0x38] sm:$0xff]
    %v72 = vld [vmem:[#allocation2 + $0x40] sm:$0xff]
    %v73 = vld [vmem:[#allocation2 + $0x48] sm:$0xff]
    %v74 = vld [vmem:[#allocation2 + $0x50] sm:$0xff]
    %v75 = vld [vmem:[#allocation2 + $0x58] sm:$0xff]
    %v76 = vld [vmem:[#allocation2 + $0x60] sm:$0xff]
    %v77 = vld [vmem:[#allocation2 + $0x68] sm:$0xff]
    %v78 = vld [vmem:[#allocation2 + $0x70] sm:$0xff]
    %v79 = vld [vmem:[#allocation2 + $0x78] sm:$0xff]
    %v80 = vpack.c.bf16 %v65, %v64
    %v81 = vpack.c.bf16 %v67, %v66
    %v82 = vpack.c.bf16 %v69, %v68
    %v83 = vpack.c.bf16 %v71, %v70
    %v84 = vpack.c.bf16 %v73, %v72
    %v85 = vpack.c.bf16 %v75, %v74
    %v86 = vpack.c.bf16 %v77, %v76
    %v87 = vpack.c.bf16 %v79, %v78
    %v88 = vld [vmem:[#allocation5] sm:$0xff]
    %v89 = vld [vmem:[#allocation5 + $0x8] sm:$0xf]
    %v90 = vld [vmem:[#allocation5 + $0xc] sm:$0xff]
    %v91 = vld [vmem:[#allocation5 + $0x14] sm:$0xf]
    %v92 = vld [vmem:[#allocation5 + $0x18] sm:$0xff]
    %v93 = vld [vmem:[#allocation5 + $0x20] sm:$0xf]
    %v94 = vld [vmem:[#allocation5 + $0x24] sm:$0xff]
    %v95 = vld [vmem:[#allocation5 + $0x2c] sm:$0xf]
    %v96 = vld [vmem:[#allocation5 + $0x30] sm:$0xff]
    %v97 = vld [vmem:[#allocation5 + $0x38] sm:$0xf]
    %v98 = vld [vmem:[#allocation5 + $0x3c] sm:$0xff]
    %v99 = vld [vmem:[#allocation5 + $0x44] sm:$0xf]
    %v100 = vld [vmem:[#allocation5 + $0x48] sm:$0xff]
    %v101 = vld [vmem:[#allocation5 + $0x50] sm:$0xf]
    %v102 = vld [vmem:[#allocation5 + $0x54] sm:$0xff]
    %v103 = vld [vmem:[#allocation5 + $0x5c] sm:$0xf]
    %v104 = vld [vmem:[#allocation5 + $0x60] sm:$0xff]
    %v105 = vld [vmem:[#allocation5 + $0x68] sm:$0xf]
    %v106 = vld [vmem:[#allocation5 + $0x6c] sm:$0xff]
    %v107 = vld [vmem:[#allocation5 + $0x74] sm:$0xf]
    %v108 = vld [vmem:[#allocation5 + $0x78] sm:$0xff]
    %v109 = vld [vmem:[#allocation5 + $0x80] sm:$0xf]
    %v110 = vld [vmem:[#allocation5 + $0x84] sm:$0xff]
    %v111 = vld [vmem:[#allocation5 + $0x8c] sm:$0xf]
    %v112 = vld [vmem:[#allocation5 + $0x90] sm:$0xff]
    %v113 = vld [vmem:[#allocation5 + $0x98] sm:$0xf]
    %v114 = vld [vmem:[#allocation5 + $0x9c] sm:$0xff]
    %v115 = vld [vmem:[#allocation5 + $0xa4] sm:$0xf]
    %v116 = vld [vmem:[#allocation5 + $0xa8] sm:$0xff]
    %v117 = vld [vmem:[#allocation5 + $0xb0] sm:$0xf]
    %v118 = vld [vmem:[#allocation5 + $0xb4] sm:$0xff]
    %v119 = vld [vmem:[#allocation5 + $0xbc] sm:$0xf]
    %v120 = vld [vmem:[#allocation7] sm:$0x7]
    %v122 = vperm.slane %v120, 0
    %v123 = vperm.slane %v120, 1
    %v124 = vperm.slane %v120, 2
    %v160 = vunpack.c.l.b16 %v88
    %v161 = vunpack.c.h.b16 %v88
    %v162 = vunpack.c.l.b16 %v89
    %v163 = vunpack.c.l.b16 %v90
    %v164 = vunpack.c.h.b16 %v90
    %v165 = vunpack.c.l.b16 %v91
    %v166 = vunpack.c.l.b16 %v92
    %v167 = vunpack.c.h.b16 %v92
    %v168 = vunpack.c.l.b16 %v93
    %v169 = vunpack.c.l.b16 %v94
    %v170 = vunpack.c.h.b16 %v94
    %v171 = vunpack.c.l.b16 %v95
    %v172 = vunpack.c.l.b16 %v96
    %v173 = vunpack.c.h.b16 %v96
    %v174 = vunpack.c.l.b16 %v97
    %v175 = vunpack.c.l.b16 %v98
    %v176 = vunpack.c.h.b16 %v98
    %v177 = vunpack.c.l.b16 %v99
    %v178 = vunpack.c.l.b16 %v100
    %v179 = vunpack.c.h.b16 %v100
    %v180 = vunpack.c.l.b16 %v101
    %v181 = vunpack.c.l.b16 %v102
    %v182 = vunpack.c.h.b16 %v102
    %v183 = vunpack.c.l.b16 %v103
    %v184 = vunpack.c.l.b16 %v104
    %v185 = vunpack.c.h.b16 %v104
    %v186 = vunpack.c.l.b16 %v105
    %v187 = vunpack.c.l.b16 %v106
    %v188 = vunpack.c.h.b16 %v106
    %v189 = vunpack.c.l.b16 %v107
    %v190 = vunpack.c.l.b16 %v108
    %v191 = vunpack.c.h.b16 %v108
    %v192 = vunpack.c.l.b16 %v109
    %v193 = vunpack.c.l.b16 %v110
    %v194 = vunpack.c.h.b16 %v110
    %v195 = vunpack.c.l.b16 %v111
    %v196 = vunpack.c.l.b16 %v112
    %v197 = vunpack.c.h.b16 %v112
    %v198 = vunpack.c.l.b16 %v113
    %v199 = vunpack.c.l.b16 %v114
    %v200 = vunpack.c.h.b16 %v114
    %v201 = vunpack.c.l.b16 %v115
    %v202 = vunpack.c.l.b16 %v116
    %v203 = vunpack.c.h.b16 %v116
    %v204 = vunpack.c.l.b16 %v117
    %v205 = vunpack.c.l.b16 %v118
    %v206 = vunpack.c.h.b16 %v118
    %v207 = vunpack.c.l.b16 %v119
    %v208 = vpack.c.b16 %v163, %v160
    %v209 = vpack.c.b16 %v164, %v161
    %v210 = vpack.c.b16 %v165, %v162
    %v211 = vpack.c.b16 %v169, %v166
    %v212 = vpack.c.b16 %v170, %v167
    %v213 = vpack.c.b16 %v171, %v168
    %v214 = vpack.c.b16 %v175, %v172
    %v215 = vpack.c.b16 %v176, %v173
    %v216 = vpack.c.b16 %v177, %v174
    %v217 = vpack.c.b16 %v181, %v178
    %v218 = vpack.c.b16 %v182, %v179
    %v219 = vpack.c.b16 %v183, %v180
    %v220 = vpack.c.b16 %v187, %v184
    %v221 = vpack.c.b16 %v188, %v185
    %v222 = vpack.c.b16 %v189, %v186
    %v223 = vpack.c.b16 %v193, %v190
    %v224 = vpack.c.b16 %v194, %v191
    %v225 = vpack.c.b16 %v195, %v192
    %v226 = vpack.c.b16 %v199, %v196
    %v227 = vpack.c.b16 %v200, %v197
    %v228 = vpack.c.b16 %v201, %v198
    %v229 = vpack.c.b16 %v205, %v202
    %v230 = vpack.c.b16 %v206, %v203
    %v231 = vpack.c.b16 %v207, %v204
    %256 = vmatpush.bf16.msra.mxu0 %v229
    %257 = vmatpush.bf16.msra.mxu0 %v226
    %258 = vmatpush.bf16.msra.mxu0 %v223
    %259 = vmatpush.bf16.msra.mxu0 %v220
    %260 = vmatpush.bf16.msra.mxu0 %v217
    %261 = vmatpush.bf16.msra.mxu0 %v214
    %262 = vmatpush.bf16.msra.mxu0 %v211
    %263 = vmatpush.bf16.msra.mxu0 %v208
    %264 = vmatmul.bf16.gmra.mxu0 %v80
    %v265 = vpop.f32.mrf.mxu0
    %v266 = vadd.f32 %v122, %v265
    %v267 = vpop.f32.mrf.mxu0
    %v268 = vadd.f32 %v122, %v267
    %269 = vmatmul.bf16.gmra.mxu0 %v81
    %v270 = vpop.f32.mrf.mxu0
    %v271 = vadd.f32 %v122, %v270
    %v272 = vpop.f32.mrf.mxu0
    %v273 = vadd.f32 %v122, %v272
    %274 = vmatmul.bf16.gmra.mxu0 %v82
    %v275 = vpop.f32.mrf.mxu0
    %v276 = vadd.f32 %v122, %v275
    %v277 = vpop.f32.mrf.mxu0
    %v278 = vadd.f32 %v122, %v277
    %279 = vmatmul.bf16.gmra.mxu0 %v83
    %v280 = vpop.f32.mrf.mxu0
    %v281 = vadd.f32 %v122, %v280
    %v282 = vpop.f32.mrf.mxu0
    %v283 = vadd.f32 %v122, %v282
    %284 = vmatmul.bf16.gmra.mxu0 %v84
    %v285 = vpop.f32.mrf.mxu0
    %v286 = vadd.f32 %v122, %v285
    %v287 = vpop.f32.mrf.mxu0
    %v288 = vadd.f32 %v122, %v287
    %289 = vmatmul.bf16.gmra.mxu0 %v85
    %v290 = vpop.f32.mrf.mxu0
    %v291 = vadd.f32 %v122, %v290
    %v292 = vpop.f32.mrf.mxu0
    %v293 = vadd.f32 %v122, %v292
    %294 = vmatmul.bf16.gmra.mxu0 %v86
    %v295 = vpop.f32.mrf.mxu0
    %v296 = vadd.f32 %v122, %v295
    %v297 = vpop.f32.mrf.mxu0
    %v298 = vadd.f32 %v122, %v297
    %299 = vmatmul.bf16.gmra.mxu0 %v87
    %v300 = vpop.f32.mrf.mxu0
    %v301 = vadd.f32 %v122, %v300
    %v302 = vpop.f32.mrf.mxu0
    %v303 = vadd.f32 %v122, %v302
    %304 = vdwg.mxu0
    %305 = vmatpush.bf16.msra.mxu0 %v230
    %306 = vmatpush.bf16.msra.mxu0 %v227
    %307 = vmatpush.bf16.msra.mxu0 %v224
    %308 = vmatpush.bf16.msra.mxu0 %v221
    %309 = vmatpush.bf16.msra.mxu0 %v218
    %310 = vmatpush.bf16.msra.mxu0 %v215
    %311 = vmatpush.bf16.msra.mxu0 %v212
    %312 = vmatpush.bf16.msra.mxu0 %v209
    %313 = vmatmul.bf16.gmra.mxu0 %v80
    %v314 = vpop.f32.mrf.mxu0
    %v315 = vadd.f32 %v123, %v314
    %v316 = vpop.f32.mrf.mxu0
    %v317 = vadd.f32 %v123, %v316
    %318 = vmatmul.bf16.gmra.mxu0 %v81
    %v319 = vpop.f32.mrf.mxu0
    %v320 = vadd.f32 %v123, %v319
    %v321 = vpop.f32.mrf.mxu0
    %v322 = vadd.f32 %v123, %v321
    %323 = vmatmul.bf16.gmra.mxu0 %v82
    %v324 = vpop.f32.mrf.mxu0
    %v325 = vadd.f32 %v123, %v324
    %v326 = vpop.f32.mrf.mxu0
    %v327 = vadd.f32 %v123, %v326
    %328 = vmatmul.bf16.gmra.mxu0 %v83
    %v329 = vpop.f32.mrf.mxu0
    %v330 = vadd.f32 %v123, %v329
    %v331 = vpop.f32.mrf.mxu0
    %v332 = vadd.f32 %v123, %v331
    %333 = vmatmul.bf16.gmra.mxu0 %v84
    %v334 = vpop.f32.mrf.mxu0
    %v335 = vadd.f32 %v123, %v334
    %v336 = vpop.f32.mrf.mxu0
    %v337 = vadd.f32 %v123, %v336
    %338 = vmatmul.bf16.gmra.mxu0 %v85
    %v339 = vpop.f32.mrf.mxu0
    %v340 = vadd.f32 %v123, %v339
    %v341 = vpop.f32.mrf.mxu0
    %v342 = vadd.f32 %v123, %v341
    %343 = vmatmul.bf16.gmra.mxu0 %v86
    %v344 = vpop.f32.mrf.mxu0
    %v345 = vadd.f32 %v123, %v344
    %v346 = vpop.f32.mrf.mxu0
    %v347 = vadd.f32 %v123, %v346
    %348 = vmatmul.bf16.gmra.mxu0 %v87
    %v349 = vpop.f32.mrf.mxu0
    %v350 = vadd.f32 %v123, %v349
    %v351 = vpop.f32.mrf.mxu0
    %v352 = vadd.f32 %v123, %v351
    %353 = vdwg.mxu0
    %354 = vmatpush.bf16.msra.mxu0 %v231
    %355 = vmatpush.bf16.msra.mxu0 %v228
    %356 = vmatpush.bf16.msra.mxu0 %v225
    %357 = vmatpush.bf16.msra.mxu0 %v222
    %358 = vmatpush.bf16.msra.mxu0 %v219
    %359 = vmatpush.bf16.msra.mxu0 %v216
    %360 = vmatpush.bf16.msra.mxu0 %v213
    %361 = vmatpush.bf16.msra.mxu0 %v210
    %362 = vmatmul.bf16.gmra.mxu0 %v80
    %v363 = vpop.f32.mrf.mxu0
    %v364 = vadd.f32 %v124, %v363
    %v365 = vpop.f32.mrf.mxu0
    %v366 = vadd.f32 %v124, %v365
    %367 = vmatmul.bf16.gmra.mxu0 %v81
    %v368 = vpop.f32.mrf.mxu0
    %v369 = vadd.f32 %v124, %v368
    %v370 = vpop.f32.mrf.mxu0
    %v371 = vadd.f32 %v124, %v370
    %372 = vmatmul.bf16.gmra.mxu0 %v82
    %v373 = vpop.f32.mrf.mxu0
    %v374 = vadd.f32 %v124, %v373
    %v375 = vpop.f32.mrf.mxu0
    %v376 = vadd.f32 %v124, %v375
    %377 = vmatmul.bf16.gmra.mxu0 %v83
    %v378 = vpop.f32.mrf.mxu0
    %v379 = vadd.f32 %v124, %v378
    %v380 = vpop.f32.mrf.mxu0
    %v381 = vadd.f32 %v124, %v380
    %382 = vmatmul.bf16.gmra.mxu0 %v84
    %v383 = vpop.f32.mrf.mxu0
    %v384 = vadd.f32 %v124, %v383
    %v385 = vpop.f32.mrf.mxu0
    %v386 = vadd.f32 %v124, %v385
    %387 = vmatmul.bf16.gmra.mxu0 %v85
    %v388 = vpop.f32.mrf.mxu0
    %v389 = vadd.f32 %v124, %v388
    %v390 = vpop.f32.mrf.mxu0
    %v391 = vadd.f32 %v124, %v390
    %392 = vmatmul.bf16.gmra.mxu0 %v86
    %v393 = vpop.f32.mrf.mxu0
    %v394 = vadd.f32 %v124, %v393
    %v395 = vpop.f32.mrf.mxu0
    %v396 = vadd.f32 %v124, %v395
    %397 = vmatmul.bf16.gmra.mxu0 %v87
    %v398 = vpop.f32.mrf.mxu0
    %v399 = vadd.f32 %v124, %v398
    %v400 = vpop.f32.mrf.mxu0
    %v401 = vadd.f32 %v124, %v400
    %402 = vdwg.mxu0
    %v403 = vpack.c.bf16 %v266, %v266
    %v404 = vpack.c.bf16 %v268, %v268
    %v405 = vpack.c.bf16 %v271, %v271
    %v406 = vpack.c.bf16 %v273, %v273
    %v407 = vpack.c.bf16 %v276, %v276
    %v408 = vpack.c.bf16 %v278, %v278
    %v409 = vpack.c.bf16 %v281, %v281
    %v410 = vpack.c.bf16 %v283, %v283
    %v411 = vpack.c.bf16 %v286, %v286
    %v412 = vpack.c.bf16 %v288, %v288
    %v413 = vpack.c.bf16 %v291, %v291
    %v414 = vpack.c.bf16 %v293, %v293
    %v415 = vpack.c.bf16 %v296, %v296
    %v416 = vpack.c.bf16 %v298, %v298
    %v417 = vpack.c.bf16 %v301, %v301
    %v418 = vpack.c.bf16 %v303, %v303
    %419 = vst [vmem:[#allocation8] sm:$0xf] %v403
    %420 = vst [vmem:[#allocation8 + $0x4] sm:$0xf] %v404
    %421 = vst [vmem:[#allocation8 + $0x8] sm:$0xf] %v405
    %422 = vst [vmem:[#allocation8 + $0xc] sm:$0xf] %v406
    %423 = vst [vmem:[#allocation8 + $0x10] sm:$0xf] %v407
    %424 = vst [vmem:[#allocation8 + $0x14] sm:$0xf] %v408
    %425 = vst [vmem:[#allocation8 + $0x18] sm:$0xf] %v409
    %426 = vst [vmem:[#allocation8 + $0x1c] sm:$0xf] %v410
    %427 = vst [vmem:[#allocation8 + $0x20] sm:$0xf] %v411
    %428 = vst [vmem:[#allocation8 + $0x24] sm:$0xf] %v412
    %429 = vst [vmem:[#allocation8 + $0x28] sm:$0xf] %v413
    %430 = vst [vmem:[#allocation8 + $0x2c] sm:$0xf] %v414
    %431 = vst [vmem:[#allocation8 + $0x30] sm:$0xf] %v415
    %432 = vst [vmem:[#allocation8 + $0x34] sm:$0xf] %v416
    %433 = vst [vmem:[#allocation8 + $0x38] sm:$0xf] %v417
    %434 = vst [vmem:[#allocation8 + $0x3c] sm:$0xf] %v418
    %v435 = vpack.c.bf16 %v315, %v315
    %v436 = vpack.c.bf16 %v317, %v317
    %v437 = vpack.c.bf16 %v320, %v320
    %v438 = vpack.c.bf16 %v322, %v322
    %v439 = vpack.c.bf16 %v325, %v325
    %v440 = vpack.c.bf16 %v327, %v327
    %v441 = vpack.c.bf16 %v330, %v330
    %v442 = vpack.c.bf16 %v332, %v332
    %v443 = vpack.c.bf16 %v335, %v335
    %v444 = vpack.c.bf16 %v337, %v337
    %v445 = vpack.c.bf16 %v340, %v340
    %v446 = vpack.c.bf16 %v342, %v342
    %v447 = vpack.c.bf16 %v345, %v345
    %v448 = vpack.c.bf16 %v347, %v347
    %v449 = vpack.c.bf16 %v350, %v350
    %v450 = vpack.c.bf16 %v352, %v352
    %451 = vst [vmem:[#allocation9] sm:$0xf] %v435
    %452 = vst [vmem:[#allocation9 + $0x4] sm:$0xf] %v436
    %453 = vst [vmem:[#allocation9 + $0x8] sm:$0xf] %v437
    %454 = vst [vmem:[#allocation9 + $0xc] sm:$0xf] %v438
    %455 = vst [vmem:[#allocation9 + $0x10] sm:$0xf] %v439
    %456 = vst [vmem:[#allocation9 + $0x14] sm:$0xf] %v440
    %457 = vst [vmem:[#allocation9 + $0x18] sm:$0xf] %v441
    %458 = vst [vmem:[#allocation9 + $0x1c] sm:$0xf] %v442
    %459 = vst [vmem:[#allocation9 + $0x20] sm:$0xf] %v443
    %460 = vst [vmem:[#allocation9 + $0x24] sm:$0xf] %v444
    %461 = vst [vmem:[#allocation9 + $0x28] sm:$0xf] %v445
    %462 = vst [vmem:[#allocation9 + $0x2c] sm:$0xf] %v446
    %463 = vst [vmem:[#allocation9 + $0x30] sm:$0xf] %v447
    %464 = vst [vmem:[#allocation9 + $0x34] sm:$0xf] %v448
    %465 = vst [vmem:[#allocation9 + $0x38] sm:$0xf] %v449
    %466 = vst [vmem:[#allocation9 + $0x3c] sm:$0xf] %v450
    %v467 = vpack.c.bf16 %v364, %v364
    %v468 = vpack.c.bf16 %v366, %v366
    %v469 = vpack.c.bf16 %v369, %v369
    %v470 = vpack.c.bf16 %v371, %v371
    %v471 = vpack.c.bf16 %v374, %v374
    %v472 = vpack.c.bf16 %v376, %v376
    %v473 = vpack.c.bf16 %v379, %v379
    %v474 = vpack.c.bf16 %v381, %v381
    %v475 = vpack.c.bf16 %v384, %v384
    %v476 = vpack.c.bf16 %v386, %v386
    %v477 = vpack.c.bf16 %v389, %v389
    %v478 = vpack.c.bf16 %v391, %v391
    %v479 = vpack.c.bf16 %v394, %v394
    %v480 = vpack.c.bf16 %v396, %v396
    %v481 = vpack.c.bf16 %v399, %v399
    %v482 = vpack.c.bf16 %v401, %v401
    %483 = vst [vmem:[#allocation11] sm:$0xf] %v467
    %484 = vst [vmem:[#allocation11 + $0x4] sm:$0xf] %v468
    %485 = vst [vmem:[#allocation11 + $0x8] sm:$0xf] %v469
    %486 = vst [vmem:[#allocation11 + $0xc] sm:$0xf] %v470
    %487 = vst [vmem:[#allocation11 + $0x10] sm:$0xf] %v471
    %488 = vst [vmem:[#allocation11 + $0x14] sm:$0xf] %v472
    %489 = vst [vmem:[#allocation11 + $0x18] sm:$0xf] %v473
    %490 = vst [vmem:[#allocation11 + $0x1c] sm:$0xf] %v474
    %491 = vst [vmem:[#allocation11 + $0x20] sm:$0xf] %v475
    %492 = vst [vmem:[#allocation11 + $0x24] sm:$0xf] %v476
    %493 = vst [vmem:[#allocation11 + $0x28] sm:$0xf] %v477
    %494 = vst [vmem:[#allocation11 + $0x2c] sm:$0xf] %v478
    %495 = vst [vmem:[#allocation11 + $0x30] sm:$0xf] %v479
    %496 = vst [vmem:[#allocation11 + $0x34] sm:$0xf] %v480
    %497 = vst [vmem:[#allocation11 + $0x38] sm:$0xf] %v481
    %498 = vst [vmem:[#allocation11 + $0x3c] sm:$0xf] %v482
    // Predicated region
    $region26: #{tpu_custom_call.1} parent=1 // pred_check
      _
    $region27: #{tpu_custom_call.1} parent=1 // pred_check_branch
      %500 = sbr.rel (0) target = $region29
    $region28: #{tpu_custom_call.1} parent=1 // pred_region
      %502 = vsyncadd [#allocation4], 0
      %s503 = sshll.u32 [#allocation8], 4
      %s504 = int_to_ptr.vmem [resolvable:$true] %s503
      %s505 = sshll.u32 %s3, 4
      %s506 = int_to_ptr.hbm [resolvable:$true] %s505
      %511 = dma.vmem_to_hbm [thread:$0]  %s504, 1024, %s506, [#allocation4], 64, 64, 4
    $region29: #{tpu_custom_call.1} parent=1 // pred_fallthru
      _
    // Predicated region
    $region30: #{tpu_custom_call.1} parent=1 // pred_check
      _
    $region31: #{tpu_custom_call.1} parent=1 // pred_check_branch
      %513 = sbr.rel (0) target = $region33
    $region32: #{tpu_custom_call.1} parent=1 // pred_region
      %515 = vsyncadd [#allocation10], 0
      %s516 = sshll.u32 [#allocation9], 4
      %s517 = int_to_ptr.vmem [resolvable:$true] %s516
      %s518 = sshll.u32 %s4, 4
      %s519 = int_to_ptr.hbm [resolvable:$true] %s518
      %524 = dma.vmem_to_hbm [thread:$0]  %s517, 1024, %s519, [#allocation10], 64, 64, 4
    $region33: #{tpu_custom_call.1} parent=1 // pred_fallthru
      _
    // Predicated region
    $region34: #{tpu_custom_call.1} parent=1 // pred_check
      _
    $region35: #{tpu_custom_call.1} parent=1 // pred_check_branch
      %526 = sbr.rel (0) target = $region37
    $region36: #{tpu_custom_call.1} parent=1 // pred_region
      %528 = vsyncadd [#allocation10], 0
      %s529 = sshll.u32 [#allocation11], 4
      %s530 = int_to_ptr.vmem [resolvable:$true] %s529
      %s531 = sshll.u32 %s5, 4
      %s532 = int_to_ptr.hbm [resolvable:$true] %s531
      %537 = dma.vmem_to_hbm [thread:$0]  %s530, 1024, %s532, [#allocation10], 64, 64, 4
    $region37: #{tpu_custom_call.1} parent=1 // pred_fallthru
      _
    // Predicated region
    $region38: #{tpu_custom_call.1} parent=1 // pred_check
      _
    $region39: #{tpu_custom_call.1} parent=1 // pred_check_branch
      %539 = sbr.rel (0) target = $region41
    $region40: #{tpu_custom_call.1} parent=1 // pred_region
      %541 = dma.done [#allocation4], 1024
    $region41: #{tpu_custom_call.1} parent=1 // pred_fallthru
      _
    // Predicated region
    $region42: #{tpu_custom_call.1} parent=1 // pred_check
      _
    $region43: #{tpu_custom_call.1} parent=1 // pred_check_branch
      %543 = sbr.rel (0) target = $region45
    $region44: #{tpu_custom_call.1} parent=1 // pred_region
      %545 = dma.done [#allocation10], 1024
    $region45: #{tpu_custom_call.1} parent=1 // pred_fallthru
      _
    // Predicated region
    $region46: #{tpu_custom_call.1} parent=1 // pred_check
      _
    $region47: #{tpu_custom_call.1} parent=1 // pred_check_branch
      %547 = sbr.rel (0) target = $region49
    $region48: #{tpu_custom_call.1} parent=1 // pred_region
      %549 = dma.done [#allocation10], 1024
    $region49: #{tpu_custom_call.1} parent=1 // pred_fallthru
      _
    %550 = vsyncpa [#allocation3], 1
    %551 = vsyncpa [#allocation6], 1
    %552 = vsyncpa [#allocation4], 1
    %553 = vsyncpa [#allocation10], 1

</llo_original>
